<compile_context>
chip_gen: v7x
topology: tpu7x:2x2x1
jax: 0.10.0
libtpu: 0.0.40
codegen_flags: <defaults>
</compile_context>

<pallas_src>
import jax
import jax.numpy as jnp
from jax import lax
from jax.experimental import pallas as pl
from jax.experimental.pallas import tpu as pltpu

FEAT_DIM = 32       # synthetic per-term feature size fed to the encoder stand-in
HIDDEN = 128        # opts.term_embedding_dim
TM_EMBED = 4096     # max row tile for the embed kernel
TM_COS = 4096       # max row tile for the fused distance kernel
_MIN_SPLIT_ROWS = 512   # above this, force >=2 blocks so v7x's 2nd TC gets work


def _cdiv(a, b):
    return -(-a // b)


def _round_up(x, m):
    return _cdiv(x, m) * m


def _choose_tile(n, max_tile, granule=16, min_split_rows=_MIN_SPLIT_ROWS):
    """Pick (tile, padded_n, n_blocks).

    Pads only to the sublane granule (16 rows, bf16 packing), never to a full
    max_tile multiple, and keeps >=2 blocks once N is large enough that each
    block comfortably amortizes the per-step pipeline overhead (v7x megacore)."""
    n_g = _round_up(max(n, 1), granule)
    n_blocks = max(_cdiv(n_g, max_tile), 2 if n_g >= min_split_rows else 1)
    tm = _round_up(_cdiv(n_g, n_blocks), granule)
    n_blocks = _cdiv(n_g, tm)
    return tm, tm * n_blocks, n_blocks


# ----------------------------- Pallas kernels ------------------------------

def _embed_terms_kernel(feats_ref, w_ref, b_ref, out_ref):
    # TermEncoder stand-in: emb = tanh(feats @ W + b); bf16 in/out, f32 MXU acc.
    acc = jnp.dot(feats_ref[...], w_ref[...], preferred_element_type=jnp.float32)
    out_ref[...] = jnp.tanh(acc + b_ref[...]).astype(out_ref.dtype)


def _cosine_dist_kernel(seg_off_ref, a_ref, b_ref, out_ref):
    # Fused Prover._dist_embeddings on a lane-dense 128-wide slab.
    # Each grid block writes an independent (8,128) partial tile -> safe under
    # dimension_semantics=("parallel",); XLA sums the tiny partial array.
    i = pl.program_id(0)
    tm = a_ref.shape[0]

    a = a_ref[...].astype(jnp.float32)
    b = b_ref[...].astype(jnp.float32)

    # Both embeddings carry the same one-hot role prefix (env/ctx/goal flag), so
    # the 3 role lanes contribute exactly +1 to the dot and to each squared norm.
    # Norms are therefore >= 1 and torch's eps=1e-8 clamp is a no-op.
    dot = jnp.sum(a * b, axis=-1, keepdims=True) + 1.0
    sa = jnp.sum(a * a, axis=-1, keepdims=True) + 1.0
    sb = jnp.sum(b * b, axis=-1, keepdims=True) + 1.0
    dist = 1.0 - dot * lax.rsqrt(sa * sb)           # EUP rsqrt, no sqrt+div

    # Per-row weight 1/(3*seg_len) from scalar-prefetched segment offsets.
    row = i * tm + lax.broadcasted_iota(jnp.int32, (tm, 1), 0)
    n_seg = seg_off_ref.shape[0] - 1                # static at trace time
    w = jnp.zeros((tm, 1), jnp.float32)
    for s in range(n_seg):
        lo = seg_off_ref[s]
        hi = seg_off_ref[s + 1]
        seg_len = (hi - lo).astype(jnp.float32)
        in_seg = (row >= lo) & (row < hi)           # padded rows match nothing
        w = w + jnp.where(in_seg, jnp.float32(1.0), jnp.float32(0.0)) / (3.0 * seg_len)

    partial = jnp.sum(w * dist)
    r = lax.broadcasted_iota(jnp.int32, (8, 128), 0)
    c = lax.broadcasted_iota(jnp.int32, (8, 128), 1)
    out_ref[...] = jnp.where((r == 0) & (c == 0), partial, jnp.float32(0.0))


# ------------------------------ wrappers -----------------------------------

def embed_terms_pallas(feats, w, b, *, max_tile=TM_EMBED):
    """feats:[N,F], w:[F,H], b:[1,H] -> lane-dense term embeddings [N, H] (bf16)."""
    n, f = feats.shape
    h = w.shape[1]
    tm, n_pad, n_blocks = _choose_tile(n, max_tile)

    feats_bf = jnp.pad(feats.astype(jnp.bfloat16), ((0, n_pad - n), (0, 0)))
    w_bf = w.astype(jnp.bfloat16)
    b_f32 = b.astype(jnp.float32).reshape(1, h)

    flops = 2 * n_pad * f * h + n_pad * h
    bytes_accessed = n_pad * f * 2 + f * h * 2 + h * 4 + n_pad * h * 2

    out = pl.pallas_call(
        _embed_terms_kernel,
        out_shape=jax.ShapeDtypeStruct((n_pad, h), jnp.bfloat16),
        grid=(n_blocks,),
        in_specs=[
            pl.BlockSpec((tm, f), lambda i: (i, 0)),
            pl.BlockSpec((f, h), lambda i: (0, 0)),   # weights replicated
            pl.BlockSpec((1, h), lambda i: (0, 0)),   # bias replicated
        ],
        out_specs=pl.BlockSpec((tm, h), lambda i: (i, 0)),
        compiler_params=pltpu.CompilerParams(
            dimension_semantics=("parallel",)),
        cost_estimate=pl.CostEstimate(
            flops=flops, transcendentals=n_pad * h, bytes_accessed=bytes_accessed),
    )(feats_bf, w_bf, b_f32)
    return out[:n]


def fused_cosine_dist_pallas(a, b, seg_off, *, max_tile=TM_COS):
    """a,b:[N,128] paired embedding slabs (no role lanes), seg_off:[n_seg+1] int32
    row offsets of the env/ctx/goal segments -> scalar 1/3 * sum of per-segment
    mean cosine distances (role prefix folded in as an in-kernel constant)."""
    n, d = a.shape
    tm, n_pad, n_blocks = _choose_tile(n, max_tile)
    pad = ((0, n_pad - n), (0, 0))
    a_p = jnp.pad(a.astype(jnp.bfloat16), pad)
    b_p = jnp.pad(b.astype(jnp.bfloat16), pad)

    flops = 6 * n_pad * d + 8 * n_pad
    bytes_accessed = 2 * n_pad * d * 2 + n_blocks * 8 * 128 * 4

    partials = pl.pallas_call(
        _cosine_dist_kernel,
        out_shape=jax.ShapeDtypeStruct((n_blocks * 8, 128), jnp.float32),
        grid_spec=pltpu.PrefetchScalarGridSpec(
            num_scalar_prefetch=1,
            grid=(n_blocks,),
            in_specs=[
                pl.BlockSpec((tm, d), lambda i, off: (i, 0)),
                pl.BlockSpec((tm, d), lambda i, off: (i, 0)),
            ],
            out_specs=pl.BlockSpec((8, 128), lambda i, off: (i, 0)),
        ),
        compiler_params=pltpu.CompilerParams(
            dimension_semantics=("parallel",)),
        cost_estimate=pl.CostEstimate(
            flops=flops, transcendentals=n_pad, bytes_accessed=bytes_accessed),
    )(seg_off, a_p, b_p)
    return jnp.sum(partials)


def dist_embeddings_pallas(embedding1, embedding2):
    """Mirror of Prover._dist_embeddings: 1/3 * sum of per-group mean cosine
    distances.  Each of the 3 groups (env, ctx, goal) is a list of per-batch
    [*, 128] embedding slabs (role flags handled in-kernel as a constant)."""
    a_parts, b_parts, seg_lens = [], [], []
    for e1, e2 in zip(embedding1, embedding2):
        if not isinstance(e1, (list, tuple)):
            e1 = [e1]
        if not isinstance(e2, (list, tuple)):
            e2 = [e2]
        ga, gb = [], []
        for emb1, emb2 in zip(e1, e2):
            if emb1.shape[0] == 0 or emb2.shape[0] == 0:
                continue
            ga.append(emb1)
            gb.append(emb2)
        if not ga:
            continue
        a_parts.append(ga[0] if len(ga) == 1 else jnp.concatenate(ga, axis=0))
        b_parts.append(gb[0] if len(gb) == 1 else jnp.concatenate(gb, axis=0))
        seg_lens.append(int(a_parts[-1].shape[0]))
    if not a_parts:
        return jnp.float32(0.0)

    a = a_parts[0] if len(a_parts) == 1 else jnp.concatenate(a_parts, axis=0)
    b = b_parts[0] if len(b_parts) == 1 else jnp.concatenate(b_parts, axis=0)
    offsets = [0]
    for l in seg_lens:
        offsets.append(offsets[-1] + l)
    seg_off = jnp.asarray(offsets, jnp.int32)
    return fused_cosine_dist_pallas(a, b, seg_off)


def prover_embed_terms(feats, w, b, env_sizes, ctx_sizes, batch):
    """Glue mirroring Prover.embed_terms term ordering, role flags and splits.

    Returns both the module-contract [*, 3+H] per-batch embeddings (for the
    tactic decoder) and the lane-dense 128-wide slab views used by the fused
    distance kernel (no 131-lane array ever enters a Pallas kernel)."""
    n_env, n_ctx, n_goal = sum(env_sizes), sum(ctx_sizes), batch

    emb = embed_terms_pallas(feats, w, b)                  # [N, HIDDEN], bf16, lane-dense

    # role flags (col 0 = env, 1 = context, 2 = goal); built in XLA only for the
    # module-contract outputs, never DMA'd into a kernel.
    role_ids = jnp.array([0] * n_env + [1] * n_ctx + [2] * n_goal, jnp.int32)
    roles = jax.nn.one_hot(role_ids, 3, dtype=emb.dtype)
    out = jnp.concatenate([roles, emb], axis=1)            # [N, 3 + HIDDEN]

    # lane-dense slab views (distance path)
    env_slab, ctx_slab = [], []
    j = 0
    for s in env_sizes:
        env_slab.append(emb[j:j + s]); j += s
    for s in ctx_sizes:
        ctx_slab.append(emb[j:j + s]); j += s
    goal_slab = emb[j:j + n_goal]

    # module-contract outputs (decoder-facing)
    env_emb, ctx_emb = [], []
    j = 0
    for s in env_sizes:
        env_emb.append(out[j:j + s]); j += s
    for s in ctx_sizes:
        ctx_emb.append(out[j:j + s]); j += s
    goal_emb = out[j:j + n_goal]                           # [batch, 3+HIDDEN]

    return (env_emb, ctx_emb, goal_emb), (env_slab, ctx_slab, goal_slab), roles, emb, out


# --------------------------------- main -------------------------------------

if __name__ == "__main__":
    key = jax.random.PRNGKey(0)
    k1, k2, k3, k4 = jax.random.split(key, 4)

    batch = 2
    env_sizes = [3, 2]
    ctx_sizes = [2, 1]
    n_total = sum(env_sizes) + sum(ctx_sizes) + batch   # 10 terms

    # deterministic synthetic inputs / parameters
    feats = jax.random.normal(k1, (n_total, FEAT_DIM), jnp.float32)
    w = jax.random.normal(k2, (FEAT_DIM, HIDDEN), jnp.float32) / jnp.sqrt(
        jnp.float32(FEAT_DIM))
    b = 0.01 * jax.random.normal(k3, (1, HIDDEN), jnp.float32)

    (env_emb, ctx_emb, goal_emb), (env_slab, ctx_slab, goal_slab), roles, emb, out = \
        prover_embed_terms(feats, w, b, env_sizes, ctx_sizes, batch)
    out = jax.block_until_ready(out)

    # pure-JAX reference (same bf16 input cast, f32 accumulation; bf16 output ->
    # tolerance relaxed to ~1e-2 absolute)
    feats_bf = feats.astype(jnp.bfloat16).astype(jnp.float32)
    w_bf = w.astype(jnp.bfloat16).astype(jnp.float32)
    ref_emb = jnp.tanh(feats_bf @ w_bf + b)
    assert out.shape == (n_total, 3 + HIDDEN)
    assert emb.dtype == jnp.bfloat16
    assert jnp.allclose(emb.astype(jnp.float32), ref_emb, atol=8e-3, rtol=8e-3), \
        "embed_terms mismatch"
    assert jnp.allclose(env_emb[0][:, 0].astype(jnp.float32), 1.0)
    assert jnp.allclose(ctx_emb[0][:, 1].astype(jnp.float32), 1.0)
    assert jnp.allclose(goal_emb[:, 2].astype(jnp.float32), 1.0)

    # exercise the fused Prover._dist_embeddings kernel against a perturbed copy
    noise = 0.01 * jax.random.normal(k4, emb.shape, jnp.float32)
    emb2 = (emb.astype(jnp.float32) + noise).astype(jnp.bfloat16)
    ne = sum(env_sizes)
    nc = sum(ctx_sizes)
    p_env = [emb2[0:env_sizes[0]], emb2[env_sizes[0]:ne]]
    p_ctx = [emb2[ne:ne + ctx_sizes[0]], emb2[ne + ctx_sizes[0]:ne + nc]]
    p_goal = emb2[ne + nc:n_total]

    dist = dist_embeddings_pallas(
        (env_slab, ctx_slab, goal_slab), (p_env, p_ctx, p_goal))
    dist = jax.block_until_ready(dist)

    # reference: exact 131-dim cosine (role prefix + slab), sqrt/div, torch eps
    roles_f32 = roles.astype(jnp.float32)
    x1 = jnp.concatenate([roles_f32, emb.astype(jnp.float32)], axis=1)
    x2 = jnp.concatenate([roles_f32, emb2.astype(jnp.float32)], axis=1)

    def _ref_cos_dist(u, v):
        eps = 1e-8
        dot = jnp.sum(u * v, axis=-1)
        nu = jnp.maximum(jnp.sqrt(jnp.sum(u * u, axis=-1)), eps)
        nv = jnp.maximum(jnp.sqrt(jnp.sum(v * v, axis=-1)), eps)
        return 1.0 - dot / (nu * nv)

    d_all = _ref_cos_dist(x1, x2)
    ref_dist = (jnp.mean(d_all[0:ne]) + jnp.mean(d_all[ne:ne + nc])
                + jnp.mean(d_all[ne + nc:n_total])) / 3.0
    assert jnp.allclose(dist, ref_dist, atol=1e-5, rtol=1e-3), "dist mismatch"

    # TODO(synk): tactic_decoder(environment, local_context, goal, actions,
    #             teacher_forcing) is grammar-constrained autoregressive decoding
    #             with no clean static Pallas formulation; forward ends here.
    print("KERNEL_OK")
</pallas_src>

<mosaic_0001>
module attributes {stable_mosaic.version = 11 : i64} {
  func.func @_embed_terms_kernel(%arg0: i32, %arg1: memref<16x32xbf16, #tpu.memory_space<vmem>>, %arg2: memref<32x128xbf16, #tpu.memory_space<vmem>>, %arg3: memref<1x128xf32, #tpu.memory_space<vmem>>, %arg4: memref<16x128xbf16, #tpu.memory_space<vmem>>) attributes {dimension_semantics = [#tpu.dimension_semantics<parallel>], iteration_bounds = array<i64: 1>, scalar_prefetch = 0 : i64, scratch_operands = 0 : i64, tpu.core_type = #tpu.core_type<tc>, window_params = [{transform_indices = @transform_0, window_bounds = array<i64: 16, 32>}, {pipeline_mode = #tpu.pipeline_mode<synchronous>, transform_indices = @transform_1, window_bounds = array<i64: 32, 128>}, {pipeline_mode = #tpu.pipeline_mode<synchronous>, transform_indices = @transform_2, window_bounds = array<i64: 1, 128>}, {transform_indices = @transform_3, window_bounds = array<i64: 16, 128>}]} {
    %c0 = arith.constant 0 : index
    %c0_0 = arith.constant 0 : index
    %0 = vector.load %arg1[%c0, %c0_0] : memref<16x32xbf16, #tpu.memory_space<vmem>>, vector<16x32xbf16>
    %c0_1 = arith.constant 0 : index
    %c0_2 = arith.constant 0 : index
    %1 = vector.load %arg2[%c0_1, %c0_2] : memref<32x128xbf16, #tpu.memory_space<vmem>>, vector<32x128xbf16>
    %cst = arith.constant dense<0.000000e+00> : vector<16x128xf32>
    %2 = tpu.matmul %0, %1, %cst {dimension_numbers = #tpu.dot_dimension_numbers<[1], [0], [0], [1], [0, 0, 1, 1], [], []>} : vector<16x32xbf16>, vector<32x128xbf16>, vector<16x128xf32> -> vector<16x128xf32>
    %c0_3 = arith.constant 0 : index
    %c0_4 = arith.constant 0 : index
    %3 = vector.load %arg3[%c0_3, %c0_4] : memref<1x128xf32, #tpu.memory_space<vmem>>, vector<1x128xf32>
    %4 = vector.broadcast %3 : vector<1x128xf32> to vector<16x128xf32>
    %5 = arith.addf %2, %4 : vector<16x128xf32>
    %6 = math.tanh %5 : vector<16x128xf32>
    %7 = arith.truncf %6 : vector<16x128xf32> to vector<16x128xbf16>
    %c0_5 = arith.constant 0 : index
    %c0_6 = arith.constant 0 : index
    %8 = vector.load %arg4[%c0_5, %c0_6] : memref<16x128xbf16, #tpu.memory_space<vmem>>, vector<16x128xbf16>
    tpu.vector_store %arg4[%c0_5, %c0_6], %7 {strides = array<i32>} : memref<16x128xbf16, #tpu.memory_space<vmem>>, vector<16x128xbf16>,
    return
  }
  func.func @transform_0(%arg0: i32) -> (i32, i32) {
    %c0_i32 = arith.constant 0 : i32
    %c0_i32_0 = arith.constant 0 : i32
    return %arg0, %c0_i32 : i32, i32
  }
  func.func @transform_1(%arg0: i32) -> (i32, i32) {
    %c0_i32 = arith.constant 0 : i32
    %c0_i32_0 = arith.constant 0 : i32
    %c0_i32_1 = arith.constant 0 : i32
    return %c0_i32, %c0_i32_0 : i32, i32
  }
  func.func @transform_2(%arg0: i32) -> (i32, i32) {
    %c0_i32 = arith.constant 0 : i32
    %c0_i32_0 = arith.constant 0 : i32
    %c0_i32_1 = arith.constant 0 : i32
    return %c0_i32, %c0_i32_0 : i32, i32
  }
  func.func @transform_3(%arg0: i32) -> (i32, i32) {
    %c0_i32 = arith.constant 0 : i32
    %c0_i32_0 = arith.constant 0 : i32
    return %arg0, %c0_i32 : i32, i32
  }
}

</mosaic_0001>

<llo_original>
// kernel: tpu_custom_call.1
$region0: #{tpu_custom_call.1}
  #allocation0 [shape = 'u32[]', space=smem, size = 0x4, offset = 0x4, fixed_abs, tag = 'smem constant byte address 0x4 - core index']
  #allocation1 [shape = 'u32[144,128]{1,0:T(1,128)}', space=vmem, size = 0x12000, scoped, tag = 'internal scratch']
  %s0 = inlined_call_operand.hbm [shape: bf16[16,32], index: 0, kind: input, shape index: {}]
  %s1 = inlined_call_operand.hbm [shape: bf16[32,128], index: 1, kind: input, shape index: {}]
  %s2 = inlined_call_operand.vmem [shape: f32[1,128], index: 2, kind: input, shape index: {}]
  %s3 = inlined_call_operand.hbm [shape: bf16[16,128], index: 3, kind: output, shape index: {}]
  %s4 = sld [smem:[#allocation0]]
  $region30: #{tpu_custom_call.1} parent=0
    _
  %s6 = ssub.s32 1, %s4
  %s7 = scalar_select 0, %s6, %s4
  $region1: #{tpu_custom_call.1} parent=0
    #allocation2 [shape = 'u8[4096]{0}', space=vmem, size = 0x1000, scoped, tag = 'input window, operand 0, single buffered']
    #allocation3 [shape = 's32[1]{0}', space=sflag, size = 0x4, scoped, tag = 'scoped memory for tpu_custom_call.1']
    #allocation4 [shape = 's32[1]{0}', space=sflag, size = 0x4, scoped, tag = 'scoped memory for tpu_custom_call.1']
    #allocation5 [shape = 'u8[8192]{0}', space=vmem, size = 0x2000, scoped, tag = 'input window, operand 1, single buffered']
    #allocation6 [shape = 's32[1]{0}', space=sflag, size = 0x4, scoped, tag = 'scoped memory for tpu_custom_call.1']
    #allocation7 [shape = 'u8[4096]{0}', space=vmem, size = 0x1000, scoped, tag = 'output window, operand 0, single buffered']
    %8 = vsyncpa [#allocation3], 0
    %9 = vsyncpa [#allocation6], 0
    %10 = vsyncpa [#allocation4], 0
    // Predicated region
    $region2: #{tpu_custom_call.1} parent=1 // pred_check
      _
    $region3: #{tpu_custom_call.1} parent=1 // pred_check_branch
      %12 = sbr.rel (0) target = $region5
    $region4: #{tpu_custom_call.1} parent=1 // pred_region
      %s14 = ssub.s32 128, 128
      %15 = vsyncadd [#allocation3], %s14
      %s16 = sshll.u32 [#allocation2], 4
      %s17 = int_to_ptr.vmem [resolvable:$true] %s16
      %22 = dma.hbm_to_vmem [thread:$0]  %s0, 128, %s17, [#allocation3], 64, 64, 4
    $region5: #{tpu_custom_call.1} parent=1 // pred_fallthru
      _
    // Predicated region
    $region6: #{tpu_custom_call.1} parent=1 // pred_check
      _
    $region7: #{tpu_custom_call.1} parent=1 // pred_check_branch
      %24 = sbr.rel (0) target = $region9
    $region8: #{tpu_custom_call.1} parent=1 // pred_region
      %s26 = ssub.s32 256, 256
      %27 = vsyncadd [#allocation6], %s26
      %s28 = sshll.u32 [#allocation5], 4
      %s29 = int_to_ptr.vmem [resolvable:$true] %s28
      %34 = dma.hbm_to_vmem [thread:$0]  %s1, 256, %s29, [#allocation6], 64, 64, 4
    $region9: #{tpu_custom_call.1} parent=1 // pred_fallthru
      _
    // Predicated region
    $region10: #{tpu_custom_call.1} parent=1 // pred_check
      _
    $region11: #{tpu_custom_call.1} parent=1 // pred_check_branch
      %36 = sbr.rel (0) target = $region13
    $region12: #{tpu_custom_call.1} parent=1 // pred_region
      _
    $region13: #{tpu_custom_call.1} parent=1 // pred_fallthru
      _
    // Predicated region
    $region14: #{tpu_custom_call.1} parent=1 // pred_check
      _
    $region15: #{tpu_custom_call.1} parent=1 // pred_check_branch
      %38 = sbr.rel (0) target = $region17
    $region16: #{tpu_custom_call.1} parent=1 // pred_region
      %39 = dma.done [#allocation3], 128
    $region17: #{tpu_custom_call.1} parent=1 // pred_fallthru
      _
    // Predicated region
    $region18: #{tpu_custom_call.1} parent=1 // pred_check
      _
    $region19: #{tpu_custom_call.1} parent=1 // pred_check_branch
      %41 = sbr.rel (0) target = $region21
    $region20: #{tpu_custom_call.1} parent=1 // pred_region
      %42 = dma.done [#allocation6], 256
    $region21: #{tpu_custom_call.1} parent=1 // pred_fallthru
      _
    %v44 = vld [vmem:[#allocation2] sm:$0xf]
    %v45 = vld [vmem:[#allocation2 + $0x4] sm:$0xf]
    %v46 = vld [vmem:[#allocation5] sm:$0xf]
    %v47 = vld [vmem:[#allocation5 + $0x4] sm:$0xf]
    %v48 = vld [vmem:[#allocation5 + $0x8] sm:$0xf]
    %v49 = vld [vmem:[#allocation5 + $0xc] sm:$0xf]
    %v50 = vld [vmem:[%s2] sm:$0x1]
    %v52 = vlaneseq
    %v53 = vshrl.u32 %v52, 7
    %v54 = vsub.s32 0, %v53
    %v55 = vrot.slane %v50, %v54
    %v59 = vunpack.c.l.b16 %v44
    %v60 = vunpack.c.l.b16 %v45
    %v61 = vpack.c.b16 %v60, %v59
    %v66 = vunpack.c.l.b16 %v46
    %v67 = vunpack.c.l.b16 %v47
    %v68 = vunpack.c.l.b16 %v48
    %v69 = vunpack.c.l.b16 %v49
    %v70 = vpack.c.b16 %v67, %v66
    %v71 = vpack.c.b16 %v69, %v68
    %vm74 = vcmask 261120
    %v76 = vsel %vm74, %v61, 0
    %78 = vmatprep.subr.bf16.mxu0 0
    %79 = vmatpush1.bf16.msra.mxu0 %v70
    %80 = vmatprep.subr.bf16.mxu0 0
    %81 = vmatpush1.bf16.msra.mxu0 %v71
    %82 = vmatprep.subr.bf16.mxu0 0
    %83 = vmatpush1.bf16.msra.mxu0 0
    %84 = vmatprep.subr.bf16.mxu0 0
    %85 = vmatpush1.bf16.msra.mxu0 0
    %86 = vmatprep.subr.bf16.mxu0 0
    %87 = vmatpush1.bf16.msra.mxu0 0
    %88 = vmatprep.subr.bf16.mxu0 0
    %89 = vmatpush1.bf16.msra.mxu0 0
    %90 = vmatprep.subr.bf16.mxu0 0
    %91 = vmatpush1.bf16.msra.mxu0 0
    %92 = vmatprep.subr.bf16.mxu0 0
    %93 = vmatpush1.bf16.msra.mxu0 0
    %94 = vmatprep.subr.bf16.mxu0 0
    %95 = vmatpush1.bf16.msra.mxu0 0
    %96 = vmatprep.subr.bf16.mxu0 0
    %97 = vmatpush1.bf16.msra.mxu0 0
    %98 = vmatprep.subr.bf16.mxu0 0
    %99 = vmatpush1.bf16.msra.mxu0 0
    %100 = vmatprep.subr.bf16.mxu0 0
    %101 = vmatpush1.bf16.msra.mxu0 0
    %102 = vmatprep.subr.bf16.mxu0 0
    %103 = vmatpush1.bf16.msra.mxu0 0
    %104 = vmatprep.subr.bf16.mxu0 0
    %105 = vmatpush1.bf16.msra.mxu0 0
    %106 = vmatprep.subr.bf16.mxu0 0
    %107 = vmatpush1.bf16.msra.mxu0 0
    %108 = vmatprep.subr.bf16.mxu0 0
    %109 = vmatpush1.bf16.msra.mxu0 0
    %110 = vmatprep.mubr.bf16.mxu0 0
    %111 = vmatmul.mubr.bf16.gmra.mrb[0].mxu0 %v76
    %v112 = vpop.f32.mrb[0].mxu0
    %v113 = vadd.f32 %v55, %v112
    %v114 = vpop.f32.mrb[0].mxu0
    %v115 = vpop.f32.mrb[0].mxu0
    %v116 = vadd.f32 %v55, %v115
    %v117 = vpop.f32.mrb[0].mxu0
    %118 = vdwg.mxu0
    %v119 = vtanh.pop %v113
    %v120 = vtanh.pop %v116
    %v121 = vpack.c.bf16 %v120, %v119
    %v123 = vunpack.c.l.b16 %v121
    %v124 = vunpack.c.h.b16 %v121
    %v125 = vpack.c.b16 %v123, %v123
    %v126 = vpack.c.b16 %v124, %v124
    %129 = vst [vmem:[#allocation7] sm:$0xf] %v125
    %130 = vst [vmem:[#allocation7 + $0x4] sm:$0xf] %v126
    // Predicated region
    $region22: #{tpu_custom_call.1} parent=1 // pred_check
      _
    $region23: #{tpu_custom_call.1} parent=1 // pred_check_branch
      %132 = sbr.rel (0) target = $region25
    $region24: #{tpu_custom_call.1} parent=1 // pred_region
      %s134 = ssub.s32 128, 128
      %135 = vsyncadd [#allocation4], %s134
      %s136 = sshll.u32 [#allocation7], 4
      %s137 = int_to_ptr.vmem [resolvable:$true] %s136
      %142 = dma.vmem_to_hbm [thread:$0]  %s137, 128, %s3, [#allocation4], 64, 64, 4
    $region25: #{tpu_custom_call.1} parent=1 // pred_fallthru
      _
    // Predicated region
    $region26: #{tpu_custom_call.1} parent=1 // pred_check
      _
    $region27: #{tpu_custom_call.1} parent=1 // pred_check_branch
      %144 = sbr.rel (0) target = $region29
    $region28: #{tpu_custom_call.1} parent=1 // pred_region
      %145 = dma.done [#allocation4], 128
    $region29: #{tpu_custom_call.1} parent=1 // pred_fallthru
      _
    %146 = vsyncpa [#allocation3], 1
    %147 = vsyncpa [#allocation6], 1
    %148 = vsyncpa [#allocation4], 1

</llo_original>
